<compile_context>
chip_gen: v5e
topology: v5e:2x2
jax: 0.10.0
libtpu: 0.0.40
codegen_flags: <defaults>
</compile_context>

<pallas_src>
from collections import OrderedDict
from typing import Any, Dict, Tuple

import jax
import jax.numpy as jnp
from jax.experimental import pallas as pl
from jax.experimental.pallas import tpu as pltpu


# ----------------------------------------------------------------------------
# Pallas kernel: fused, K-tiled (x @ W + b) * scale
# ----------------------------------------------------------------------------
def _linear_scale_kernel(scale_ref, x_ref, w_ref, b_ref, o_ref, acc_ref):
    k = pl.program_id(2)

    @pl.when(k == 0)
    def _init():
        acc_ref[...] = jnp.zeros_like(acc_ref)

    acc_ref[...] += jnp.dot(x_ref[...], w_ref[...],
                            preferred_element_type=jnp.float32)

    @pl.when(k == pl.num_programs(2) - 1)
    def _finalize():
        # bias + scale epilogue runs once per (i, j) output tile, in f32.
        o_ref[...] = ((acc_ref[...] + b_ref[...]) * scale_ref[0]).astype(o_ref.dtype)


def _round_up(x: int, m: int) -> int:
    return ((x + m - 1) // m) * m


def _choose_tile(dim: int, max_tile: int, align: int) -> Tuple[int, int]:
    """Return (tile, padded_dim). max_tile must be a multiple of align."""
    padded = _round_up(dim, align)
    if padded <= max_tile:
        return padded, padded
    return max_tile, _round_up(dim, max_tile)


def linear_scale_pallas(x: jax.Array, w: jax.Array, b: jax.Array, scale,
                        *, compute_dtype=jnp.bfloat16,
                        max_tm: int = 128, max_tn: int = 256,
                        max_tk: int = 512) -> jax.Array:
    """x: [B, D_in], w: [D_in, D_out], b: [D_out], scale: scalar -> [B, D_out]."""
    B, Din = x.shape
    Dout = w.shape[1]

    tm, Mp = _choose_tile(B, max_tm, 8)        # sublane-aligned rows
    tn, Np = _choose_tile(Dout, max_tn, 128)   # lane-dense output (multiple of 128)
    tk, Kp = _choose_tile(Din, max_tk, 128)    # streamed reduction axis

    xc = x.astype(compute_dtype)
    wc = w.astype(compute_dtype)
    bf = b.astype(jnp.float32).reshape(1, Dout)
    if Mp != B or Kp != Din:
        xc = jnp.pad(xc, ((0, Mp - B), (0, Kp - Din)))
    if Kp != Din or Np != Dout:
        wc = jnp.pad(wc, ((0, Kp - Din), (0, Np - Dout)))
    if Np != Dout:
        bf = jnp.pad(bf, ((0, 0), (0, Np - Dout)))
    s = jnp.asarray(scale, jnp.float32).reshape((1,))

    grid = (Mp // tm, Np // tn, Kp // tk)

    bytes_accessed = (xc.size * xc.dtype.itemsize
                      + wc.size * wc.dtype.itemsize
                      + bf.size * bf.dtype.itemsize
                      + Mp * Np * jnp.dtype(x.dtype).itemsize)

    out = pl.pallas_call(
        _linear_scale_kernel,
        out_shape=jax.ShapeDtypeStruct((Mp, Np), x.dtype),
        grid_spec=pltpu.PrefetchScalarGridSpec(
            num_scalar_prefetch=0,
            grid=grid,
            in_specs=[
                pl.BlockSpec(memory_space=pltpu.SMEM),           # scale scalar
                pl.BlockSpec((tm, tk), lambda i, j, k: (i, k)),  # x tile
                pl.BlockSpec((tk, tn), lambda i, j, k: (k, j)),  # W tile (K streamed)
                pl.BlockSpec((1, tn), lambda i, j, k: (0, j)),   # bias row
            ],
            out_specs=pl.BlockSpec((tm, tn), lambda i, j, k: (i, j)),
            scratch_shapes=[pltpu.VMEM((tm, tn), jnp.float32)],  # f32 accumulator
        ),
        compiler_params=pltpu.CompilerParams(
            dimension_semantics=("parallel", "parallel", "arbitrary")),
        cost_estimate=pl.CostEstimate(
            flops=2 * Mp * Np * Kp,
            transcendentals=0,
            bytes_accessed=int(bytes_accessed)),
    )(s, xc, wc, bf)

    if Mp != B or Np != Dout:
        out = out[:B, :Dout]
    return out


# ----------------------------------------------------------------------------
# JAX-side re-implementation of the wrapper machinery (no tensor compute here)
# ----------------------------------------------------------------------------
class PatchModuleKwargsHook:
    def __init__(self) -> None:
        self.ext_kwargs: Dict[str, Any] = {}

    def __call__(self, module, args, kwargs) -> Tuple[Any, Dict[str, Any]]:
        kwargs.update(self.ext_kwargs)
        return (args, kwargs)


class JaxModule:
    """Minimal stand-in for torch.nn.Module with forward-pre-hooks (kwargs)."""

    def __init__(self) -> None:
        self._forward_pre_hooks = []

    def register_forward_pre_hook(self, hook, with_kwargs=False):
        assert with_kwargs
        self._forward_pre_hooks.append(hook)

    def __call__(self, *args, **kwargs):
        for hook in self._forward_pre_hooks:
            result = hook(self, args, kwargs)
            if result is not None:
                args, kwargs = result
        return self.forward(*args, **kwargs)

    def forward(self, *args, **kwargs):
        raise NotImplementedError


class LinearScaleModule(JaxModule):
    """Wrapped module: y = (x @ W^T + b) * scale (hot path in Pallas)."""

    def __init__(self, d_in: int, d_out: int, key: jax.Array) -> None:
        super().__init__()
        kw, kb = jax.random.split(key)
        bound = 1.0 / (d_in ** 0.5)
        # PyTorch layout [out, in], f32 — kept only for the reference check.
        self.weight = jax.random.uniform(kw, (d_out, d_in), jnp.float32,
                                         -bound, bound)
        # Pre-transposed ONCE at init to [D_in, D_out] and stored in bf16 for
        # the MXU fast path (no per-forward transpose / cast of the weight).
        self.weight_t = jnp.asarray(self.weight.T, jnp.bfloat16)
        self.bias = jax.random.uniform(kb, (d_out,), jnp.float32, -bound, bound)

    def forward(self, x, scale=1.0):
        return linear_scale_pallas(x, self.weight_t, self.bias, scale)


class PatchAbleModuleWrapper(JaxModule):
    def __init__(self, module: JaxModule) -> None:
        super().__init__()
        self.module = module
        self.replaced_module_kwargs_hook_map: "OrderedDict[str, PatchModuleKwargsHook]" = OrderedDict()

    def forward(self, /, **kwargs):
        for k, v in self.replaced_module_kwargs_hook_map.items():
            hook_kwarg_prefix = f"{k}_"
            for arg_name in list(kwargs.keys()):
                if arg_name.startswith(hook_kwarg_prefix):
                    v.ext_kwargs[arg_name[len(hook_kwarg_prefix):]] = kwargs.pop(arg_name)
        return self.module(**kwargs)

    def register_forward_ext_kwargs_hook(self, hook_id):
        if hook_id in self.replaced_module_kwargs_hook_map:
            raise Exception(f"hook_id {hook_id} already registered")
        self.replaced_module_kwargs_hook_map[hook_id] = PatchModuleKwargsHook()

    def apply_forward_ext_kwargs_hook(self, module: JaxModule, hook_id):
        ext_kwargs_hook = self.replaced_module_kwargs_hook_map.get(hook_id, None)
        if ext_kwargs_hook is None:
            raise Exception(f"module_ext_kwargs_hook_id {hook_id} not registered")
        module.register_forward_pre_hook(ext_kwargs_hook, with_kwargs=True)


# ----------------------------------------------------------------------------
if __name__ == "__main__":
    key = jax.random.PRNGKey(0)
    k_x, k_w = jax.random.split(key)

    B, D_IN, D_OUT = 8, 32, 32
    x = jax.random.normal(k_x, (B, D_IN), jnp.float32)

    inner = LinearScaleModule(D_IN, D_OUT, k_w)
    wrapper = PatchAbleModuleWrapper(inner)

    # Register a kwargs hook and route "myhook_scale" -> inner's "scale" kwarg.
    wrapper.register_forward_ext_kwargs_hook("myhook")
    wrapper.apply_forward_ext_kwargs_hook(inner, "myhook")

    out = wrapper(x=x, myhook_scale=2.0)
    out = jax.block_until_ready(out)

    # Reference check (plain JAX, f32) — tolerance loosened for bf16 operands.
    ref = (x @ inner.weight.T + inner.bias) * 2.0
    assert out.shape == (B, D_OUT)
    assert jnp.allclose(out, ref, atol=3e-2, rtol=3e-2), \
        float(jnp.max(jnp.abs(out - ref)))

    print("KERNEL_OK")
</pallas_src>

<mosaic_0001>
module attributes {stable_mosaic.version = 11 : i64} {
  func.func @_linear_scale_kernel(%arg0: i32, %arg1: i32, %arg2: i32, %arg3: memref<1xf32, #tpu.memory_space<smem>>, %arg4: memref<8x128xbf16, #tpu.memory_space<vmem>>, %arg5: memref<128x128xbf16, #tpu.memory_space<vmem>>, %arg6: memref<1x128xf32, #tpu.memory_space<vmem>>, %arg7: memref<8x128xf32, #tpu.memory_space<vmem>>, %arg8: memref<8x128xf32, #tpu.memory_space<vmem>>) attributes {dimension_semantics = [#tpu.dimension_semantics<parallel>, #tpu.dimension_semantics<parallel>, #tpu.dimension_semantics<arbitrary>], iteration_bounds = array<i64: 1, 1, 1>, scalar_prefetch = 0 : i64, scratch_operands = 1 : i64, tpu.core_type = #tpu.core_type<tc>, window_params = [{transform_indices = @transform_0, window_bounds = array<i64: 1>}, {transform_indices = @transform_1, window_bounds = array<i64: 8, 128>}, {transform_indices = @transform_2, window_bounds = array<i64: 128, 128>}, {transform_indices = @transform_3, window_bounds = array<i64: 1, 128>}, {transform_indices = @transform_4, window_bounds = array<i64: 8, 128>}]} {
    %c0_i32 = arith.constant 0 : i32
    %0 = arith.cmpi eq, %arg2, %c0_i32 : i32
    %1 = arith.extui %0 : i1 to i32
    %c0_i32_0 = arith.constant 0 : i32
    %2 = arith.cmpi ne, %1, %c0_i32_0 : i32
    scf.if %2 {
      %cst_10 = arith.constant 0.000000e+00 : f32
      %12 = vector.broadcast %cst_10 : f32 to vector<8x128xf32>
      %c0_11 = arith.constant 0 : index
      %c0_12 = arith.constant 0 : index
      %13 = vector.load %arg8[%c0_11, %c0_12] : memref<8x128xf32, #tpu.memory_space<vmem>>, vector<8x128xf32>
      tpu.vector_store %arg8[%c0_11, %c0_12], %12 {strides = array<i32>} : memref<8x128xf32, #tpu.memory_space<vmem>>, vector<8x128xf32>,
    } else {
    }
    %c0 = arith.constant 0 : index
    %c0_1 = arith.constant 0 : index
    %3 = vector.load %arg8[%c0, %c0_1] : memref<8x128xf32, #tpu.memory_space<vmem>>, vector<8x128xf32>
    %c0_2 = arith.constant 0 : index
    %c0_3 = arith.constant 0 : index
    %4 = vector.load %arg4[%c0_2, %c0_3] : memref<8x128xbf16, #tpu.memory_space<vmem>>, vector<8x128xbf16>
    %c0_4 = arith.constant 0 : index
    %c0_5 = arith.constant 0 : index
    %5 = vector.load %arg5[%c0_4, %c0_5] : memref<128x128xbf16, #tpu.memory_space<vmem>>, vector<128x128xbf16>
    %cst = arith.constant dense<0.000000e+00> : vector<8x128xf32>
    %6 = tpu.matmul %4, %5, %cst {dimension_numbers = #tpu.dot_dimension_numbers<[1], [0], [0], [1], [0, 0, 1, 1], [], []>} : vector<8x128xbf16>, vector<128x128xbf16>, vector<8x128xf32> -> vector<8x128xf32>
    %7 = arith.addf %3, %6 : vector<8x128xf32>
    %c0_6 = arith.constant 0 : index
    %c0_7 = arith.constant 0 : index
    %8 = vector.load %arg8[%c0_6, %c0_7] : memref<8x128xf32, #tpu.memory_space<vmem>>, vector<8x128xf32>
    tpu.vector_store %arg8[%c0_6, %c0_7], %7 {strides = array<i32>} : memref<8x128xf32, #tpu.memory_space<vmem>>, vector<8x128xf32>,
    %c0_i32_8 = arith.constant 0 : i32
    %9 = arith.cmpi eq, %arg2, %c0_i32_8 : i32
    %10 = arith.extui %9 : i1 to i32
    %c0_i32_9 = arith.constant 0 : i32
    %11 = arith.cmpi ne, %10, %c0_i32_9 : i32
    scf.if %11 {
      %c0_10 = arith.constant 0 : index
      %c0_11 = arith.constant 0 : index
      %12 = vector.load %arg8[%c0_10, %c0_11] : memref<8x128xf32, #tpu.memory_space<vmem>>, vector<8x128xf32>
      %c0_12 = arith.constant 0 : index
      %c0_13 = arith.constant 0 : index
      %13 = vector.load %arg6[%c0_12, %c0_13] : memref<1x128xf32, #tpu.memory_space<vmem>>, vector<1x128xf32>
      %14 = vector.broadcast %13 : vector<1x128xf32> to vector<8x128xf32>
      %15 = arith.addf %12, %14 : vector<8x128xf32>
      %c0_14 = arith.constant 0 : index
      %16 = memref.load %arg3[%c0_14] : memref<1xf32, #tpu.memory_space<smem>>
      %17 = vector.broadcast %16 : f32 to vector<8x128xf32>
      %18 = arith.mulf %15, %17 : vector<8x128xf32>
      %c0_15 = arith.constant 0 : index
      %c0_16 = arith.constant 0 : index
      %19 = vector.load %arg7[%c0_15, %c0_16] : memref<8x128xf32, #tpu.memory_space<vmem>>, vector<8x128xf32>
      tpu.vector_store %arg7[%c0_15, %c0_16], %18 {strides = array<i32>} : memref<8x128xf32, #tpu.memory_space<vmem>>, vector<8x128xf32>,
    } else {
    }
    return
  }
  func.func @transform_0(%arg0: i32, %arg1: i32, %arg2: i32) -> i32 {
    %c0_i32 = arith.constant 0 : i32
    %c0_i32_0 = arith.constant 0 : i32
    return %c0_i32 : i32
  }
  func.func @transform_1(%arg0: i32, %arg1: i32, %arg2: i32) -> (i32, i32) {
    %c0_i32 = arith.constant 0 : i32
    return %arg0, %arg2 : i32, i32
  }
  func.func @transform_2(%arg0: i32, %arg1: i32, %arg2: i32) -> (i32, i32) {
    %c0_i32 = arith.constant 0 : i32
    return %arg2, %arg1 : i32, i32
  }
  func.func @transform_3(%arg0: i32, %arg1: i32, %arg2: i32) -> (i32, i32) {
    %c0_i32 = arith.constant 0 : i32
    %c0_i32_0 = arith.constant 0 : i32
    return %c0_i32, %arg1 : i32, i32
  }
  func.func @transform_4(%arg0: i32, %arg1: i32, %arg2: i32) -> (i32, i32) {
    %c0_i32 = arith.constant 0 : i32
    return %arg0, %arg1 : i32, i32
  }
}

</mosaic_0001>

<llo_original>
// kernel: tpu_custom_call.1
$region0: #{tpu_custom_call.1}
  #allocation0 [shape = 'u32[]', space=smem, size = 0x4, offset = 0x4, fixed_abs, tag = 'smem constant byte address 0x4 - core index']
  #allocation1 [shape = 'u32[72,128]{1,0:T(1,128)}', space=vmem, size = 0x9000, scoped, tag = 'internal scratch']
  #allocation2 [shape = 'f32[8,128]{1,0:T(8,128)}', space=vmem, size = 0x1000, scoped, tag = 'scratch operand']
  #allocation3 [shape = 'f32[1]{0:T(128)S(6)}', space=smem, size = 0x200, scoped, tag = 'scoped memory for tpu_custom_call.1']
  %s0 = inlined_call_operand.<no memory space> [shape: f32[1], index: 0, kind: input, shape index: {}]
  %s1 = inlined_call_operand.hbm [shape: bf16[8,128], index: 1, kind: input, shape index: {}]
  %s2 = inlined_call_operand.hbm [shape: bf16[128,128], index: 2, kind: input, shape index: {}]
  %s3 = inlined_call_operand.vmem [shape: f32[1,128], index: 3, kind: input, shape index: {}]
  %s4 = inlined_call_operand.hbm [shape: f32[8,128], index: 4, kind: output, shape index: {}]
  %s5 = sld [smem:[#allocation0]]
  $region42: #{tpu_custom_call.1} parent=0
    _
  %s7 = ssub.s32 1, %s5
  %s8 = scalar_select 0, %s7, %s5
  %9 = sst [smem:[#allocation3]] %s0
  $region1: #{tpu_custom_call.1} parent=0
    #allocation4 [shape = 'u8[2048]{0}', space=vmem, size = 0x800, scoped, tag = 'input window, operand 1, single buffered']
    #allocation5 [shape = 's32[1]{0}', space=sflag, size = 0x4, scoped, tag = 'scoped memory for tpu_custom_call.1']
    #allocation6 [shape = 's32[1]{0}', space=sflag, size = 0x4, scoped, tag = 'scoped memory for tpu_custom_call.1']
    #allocation7 [shape = 'u8[32768]{0}', space=vmem, size = 0x8000, scoped, tag = 'input window, operand 2, single buffered']
    #allocation8 [shape = 's32[1]{0}', space=sflag, size = 0x4, scoped, tag = 'scoped memory for tpu_custom_call.1']
    #allocation9 [shape = 'u8[4096]{0}', space=vmem, size = 0x1000, scoped, tag = 'output window, operand 0, single buffered']
    %10 = vsyncpa [#allocation5], 0
    %11 = vsyncpa [#allocation8], 0
    %12 = vsyncpa [#allocation6], 0
    // Predicated region
    $region2: #{tpu_custom_call.1} parent=1 // pred_check
      _
    $region3: #{tpu_custom_call.1} parent=1 // pred_check_branch
      %14 = sbr.rel (0) target = $region5
    $region4: #{tpu_custom_call.1} parent=1 // pred_region
      _
    $region5: #{tpu_custom_call.1} parent=1 // pred_fallthru
      _
    // Predicated region
    $region6: #{tpu_custom_call.1} parent=1 // pred_check
      _
    $region7: #{tpu_custom_call.1} parent=1 // pred_check_branch
      %16 = sbr.rel (0) target = $region9
    $region8: #{tpu_custom_call.1} parent=1 // pred_region
      %18 = vsyncadd [#allocation5], 0
      %s20 = sshll.u32 %s1, 4
      %s21 = int_to_ptr.hbm [resolvable:$true] %s20
      %s22 = sshll.u32 [#allocation4], 4
      %s23 = int_to_ptr.vmem [resolvable:$true] %s22
      %25 = dma.hbm_to_vmem [thread:$0]  %s21, 64, %s23, [#allocation5]
    $region9: #{tpu_custom_call.1} parent=1 // pred_fallthru
      _
    // Predicated region
    $region10: #{tpu_custom_call.1} parent=1 // pred_check
      _
    $region11: #{tpu_custom_call.1} parent=1 // pred_check_branch
      %27 = sbr.rel (0) target = $region13
    $region12: #{tpu_custom_call.1} parent=1 // pred_region
      %29 = vsyncadd [#allocation8], 0
      %s30 = sshll.u32 %s2, 4
      %s31 = int_to_ptr.hbm [resolvable:$true] %s30
      %s32 = sshll.u32 [#allocation7], 4
      %s33 = int_to_ptr.vmem [resolvable:$true] %s32
      %38 = dma.hbm_to_vmem [thread:$0]  %s31, 1024, %s33, [#allocation8], 64, 64, 4
    $region13: #{tpu_custom_call.1} parent=1 // pred_fallthru
      _
    // Predicated region
    $region14: #{tpu_custom_call.1} parent=1 // pred_check
      _
    $region15: #{tpu_custom_call.1} parent=1 // pred_check_branch
      %40 = sbr.rel (0) target = $region17
    $region16: #{tpu_custom_call.1} parent=1 // pred_region
      _
    $region17: #{tpu_custom_call.1} parent=1 // pred_fallthru
      _
    // Predicated region
    $region18: #{tpu_custom_call.1} parent=1 // pred_check
      _
    $region19: #{tpu_custom_call.1} parent=1 // pred_check_branch
      %42 = sbr.rel (0) target = $region21
    $region20: #{tpu_custom_call.1} parent=1 // pred_region
      %44 = dma.done [#allocation5], 64
    $region21: #{tpu_custom_call.1} parent=1 // pred_fallthru
      _
    // Predicated region
    $region22: #{tpu_custom_call.1} parent=1 // pred_check
      _
    $region23: #{tpu_custom_call.1} parent=1 // pred_check_branch
      %46 = sbr.rel (0) target = $region25
    $region24: #{tpu_custom_call.1} parent=1 // pred_region
      %48 = dma.done [#allocation8], 1024
    $region25: #{tpu_custom_call.1} parent=1 // pred_fallthru
      _
    %p49 = scmp.eq.s32.totalorder 0, 0
    // Predicated region
    $region26: #{tpu_custom_call.1} parent=1 // pred_check
      %p50 = pneg %p49
    $region27: #{tpu_custom_call.1} parent=1 // pred_check_branch
      %52 = sbr.rel (%p50) target = $region29
    $region28: #{tpu_custom_call.1} parent=1 // pred_region
      %53 = vst [vmem:[#allocation2] sm:$0xff] 0.0
    $region29: #{tpu_custom_call.1} parent=1 // pred_fallthru
      _
    %v54 = vld [vmem:[#allocation2] sm:$0xff]
    %v55 = vld [vmem:[#allocation4] sm:$0xf]
    %v56 = vld [vmem:[#allocation7] sm:$0xf]
    %v57 = vld [vmem:[#allocation7 + $0x4] sm:$0xf]
    %v58 = vld [vmem:[#allocation7 + $0x8] sm:$0xf]
    %v59 = vld [vmem:[#allocation7 + $0xc] sm:$0xf]
    %v60 = vld [vmem:[#allocation7 + $0x10] sm:$0xf]
    %v61 = vld [vmem:[#allocation7 + $0x14] sm:$0xf]
    %v62 = vld [vmem:[#allocation7 + $0x18] sm:$0xf]
    %v63 = vld [vmem:[#allocation7 + $0x1c] sm:$0xf]
    %v64 = vld [vmem:[#allocation7 + $0x20] sm:$0xf]
    %v65 = vld [vmem:[#allocation7 + $0x24] sm:$0xf]
    %v66 = vld [vmem:[#allocation7 + $0x28] sm:$0xf]
    %v67 = vld [vmem:[#allocation7 + $0x2c] sm:$0xf]
    %v68 = vld [vmem:[#allocation7 + $0x30] sm:$0xf]
    %v69 = vld [vmem:[#allocation7 + $0x34] sm:$0xf]
    %v70 = vld [vmem:[#allocation7 + $0x38] sm:$0xf]
    %v71 = vld [vmem:[#allocation7 + $0x3c] sm:$0xf]
    %v88 = vunpack.c.l.b16 %v56
    %v89 = vunpack.c.l.b16 %v57
    %v90 = vunpack.c.l.b16 %v58
    %v91 = vunpack.c.l.b16 %v59
    %v92 = vunpack.c.l.b16 %v60
    %v93 = vunpack.c.l.b16 %v61
    %v94 = vunpack.c.l.b16 %v62
    %v95 = vunpack.c.l.b16 %v63
    %v96 = vunpack.c.l.b16 %v64
    %v97 = vunpack.c.l.b16 %v65
    %v98 = vunpack.c.l.b16 %v66
    %v99 = vunpack.c.l.b16 %v67
    %v100 = vunpack.c.l.b16 %v68
    %v101 = vunpack.c.l.b16 %v69
    %v102 = vunpack.c.l.b16 %v70
    %v103 = vunpack.c.l.b16 %v71
    %v104 = vpack.c.b16 %v89, %v88
    %v105 = vpack.c.b16 %v91, %v90
    %v106 = vpack.c.b16 %v93, %v92
    %v107 = vpack.c.b16 %v95, %v94
    %v108 = vpack.c.b16 %v97, %v96
    %v109 = vpack.c.b16 %v99, %v98
    %v110 = vpack.c.b16 %v101, %v100
    %v111 = vpack.c.b16 %v103, %v102
    %120 = vmatpush.bf16.msra.mxu0 %v111
    %121 = vmatpush.bf16.msra.mxu0 %v110
    %122 = vmatpush.bf16.msra.mxu0 %v109
    %123 = vmatpush.bf16.msra.mxu0 %v108
    %124 = vmatpush.bf16.msra.mxu0 %v107
    %125 = vmatpush.bf16.msra.mxu0 %v106
    %126 = vmatpush.bf16.msra.mxu0 %v105
    %127 = vmatpush.bf16.msra.mxu0 %v104
    %128 = vmatmul.bf16.gmra.mxu0 %v55
    %v129 = vpop.f32.mrf.mxu0
    %v130 = vadd.f32 0.0, %v129
    %v131 = vpop.f32.mrf.mxu0
    %132 = vdwg.mxu0
    %v133 = vadd.f32 %v54, %v130
    %134 = vst [vmem:[#allocation2] sm:$0xff] %v133
    // Predicated region
    $region30: #{tpu_custom_call.1} parent=1 // pred_check
      %p135 = pneg %p49
    $region31: #{tpu_custom_call.1} parent=1 // pred_check_branch
      %137 = sbr.rel (%p135) target = $region33
    $region32: #{tpu_custom_call.1} parent=1 // pred_region
      %v138 = vld [vmem:[#allocation2] sm:$0xff]
      %v139 = vld [vmem:[%s3] sm:$0x1]
      %v141 = vperm.slane %v139, 0
      %v143 = vadd.f32 %v138, %v141
      %s144 = sld [smem:[#allocation3]]
      %v145 = vstv %s144
      %v146 = vmul.f32 %v143, %v145
      %147 = vst [vmem:[#allocation9] sm:$0xff] %v146
    $region33: #{tpu_custom_call.1} parent=1 // pred_fallthru
      _
    // Predicated region
    $region34: #{tpu_custom_call.1} parent=1 // pred_check
      _
    $region35: #{tpu_custom_call.1} parent=1 // pred_check_branch
      %149 = sbr.rel (0) target = $region37
    $region36: #{tpu_custom_call.1} parent=1 // pred_region
      %151 = vsyncadd [#allocation6], 0
      %s153 = sshll.u32 [#allocation9], 4
      %s154 = int_to_ptr.vmem [resolvable:$true] %s153
      %s155 = sshll.u32 %s4, 4
      %s156 = int_to_ptr.hbm [resolvable:$true] %s155
      %158 = dma.vmem_to_hbm [thread:$0]  %s154, 128, %s156, [#allocation6]
    $region37: #{tpu_custom_call.1} parent=1 // pred_fallthru
      _
    // Predicated region
    $region38: #{tpu_custom_call.1} parent=1 // pred_check
      _
    $region39: #{tpu_custom_call.1} parent=1 // pred_check_branch
      %160 = sbr.rel (0) target = $region41
    $region40: #{tpu_custom_call.1} parent=1 // pred_region
      %162 = dma.done [#allocation6], 128
    $region41: #{tpu_custom_call.1} parent=1 // pred_fallthru
      _
    %163 = vsyncpa [#allocation5], 1
    %164 = vsyncpa [#allocation8], 1
    %165 = vsyncpa [#allocation6], 1

</llo_original>
